<compile_context>
chip_gen: v7x
topology: tpu7x:2x2x1
jax: 0.10.0
libtpu: 0.0.40
codegen_flags: <defaults>
</compile_context>

<pallas_src>
import functools

import jax
import jax.numpy as jnp
from jax.experimental import pallas as pl
from jax.experimental.pallas import tpu as pltpu


def _edge_response_kernel(x_ref, o_ref, acc_ref, *, H, W, bb):
    # x_ref:   (bb, H, W)  one channel of `bb` batch elements (channel squeezed).
    # o_ref:   (bb, H, W)  per-pixel edge response (written at the last channel).
    # acc_ref: (bb, H, W)  fp32 VMEM accumulator, carried across the channel axis.
    c = pl.program_id(1)
    num_c = pl.num_programs(1)

    @pl.when(c == 0)
    def _():
        acc_ref[...] = jnp.zeros_like(acc_ref)

    # Analytic, separable boundary masks (no div/mod, no index rolls):
    # the neighbour at (i+sy, j+sx) exists iff row_ok(sy) & col_ok(sx).
    row = jax.lax.broadcasted_iota(jnp.int32, (H, W), 0)
    col = jax.lax.broadcasted_iota(jnp.int32, (H, W), 1)
    ok_up = row >= 1          # neighbour at i-1 exists
    ok_dn = row <= H - 2      # neighbour at i+1 exists
    ok_lt = col >= 1          # neighbour at j-1 exists
    ok_rt = col <= W - 2      # neighbour at j+1 exists

    zero = jnp.float32(0.0)

    # Per-image loop keeps all rolls rank-2 and bounds the live fp32 working
    # set to ~6 (H, W) arrays independent of bb (bb <= 8 by wrapper policy).
    for b in range(bb):
        x = x_ref[b].astype(jnp.float32)                         # (H, W)

        # Row-shifted neighbours; out-of-image rows are pre-zeroed, which is
        # exactly unfold's zero padding under the strict `> 0` test (and also
        # removes the sublane wrap-around of the roll).  Non-negative roll
        # amounts: roll by H-1 along rows == shift by -1 (i.e. x[i+1, j]).
        x_dn = jnp.where(ok_dn, pltpu.roll(x, H - 1, 0), zero)   # x[i+1, j]
        x_up = jnp.where(ok_up, pltpu.roll(x, 1, 0), zero)       # x[i-1, j]

        def contrib(nb, lane_ok=None):
            m = nb > zero
            if lane_ok is not None:
                m = m & lane_ok                                   # mask lane wrap
            return jnp.where(m, jnp.abs(nb - x), zero)

        # Vertical neighbours: row validity already folded into x_dn / x_up.
        acc = contrib(x_dn) + contrib(x_up)
        # Horizontal and diagonal neighbours: one unit lane roll each
        # (roll by W-1 along lanes == shift by -1, i.e. column j+1).
        for src in (x, x_dn, x_up):
            acc = acc + contrib(pltpu.roll(src, W - 1, 1), ok_rt)  # (.., j+1)
            acc = acc + contrib(pltpu.roll(src, 1, 1), ok_lt)      # (.., j-1)

        acc_ref[b] = acc_ref[b] + acc

    @pl.when(c == num_c - 1)
    def _():
        o_ref[...] = acc_ref[...].astype(o_ref.dtype)


def _pick_batch_block(B, C, H, W, in_itemsize, vmem_budget_bytes, max_bb=8):
    """Batch elements per grid step.

    Largest divisor of B that (a) keeps the in-kernel per-image unroll small
    (<= max_bb), (b) leaves >= 2 batch-axis "parallel" steps whenever B >= 2 so
    both v7x TensorCores get work and the pipeline has steps to overlap, and
    (c) fits a VMEM budget that accounts for double-buffered I/O blocks, the
    fp32 accumulator scratch and the fp32 working set (not just I/O bytes).
    """
    best = 1
    for bb in range(1, min(B, max_bb) + 1):
        if B % bb != 0:
            continue
        if B >= 2 and B // bb < 2:
            continue
        per_step = (
            2 * bb * H * W * in_itemsize      # input block, double-buffered
            + 2 * bb * H * W * in_itemsize    # output block (conservative)
            + bb * H * W * 4                  # fp32 accumulator scratch
            + 8 * H * W * 4                   # fp32 per-image working set
        )
        if per_step <= vmem_budget_bytes:
            best = bb
    return best


def _vmem_policy():
    """Return (per-step VMEM budget, vmem_limit_bytes) by chip generation.

    v5e/v6e have 128 MiB physical VMEM; v7x only 64 MiB.  Unknown chips get the
    conservative (v7x) numbers.
    """
    try:
        kind = jax.devices()[0].device_kind.lower()
    except Exception:
        kind = ""
    if ("v5" in kind) or ("v6" in kind):
        return 20 * 1024 * 1024, 64 * 1024 * 1024
    return 10 * 1024 * 1024, 48 * 1024 * 1024


def edge_response(images):
    """images: (B, C, H, W) -> (B, H, W) edge response (PyTorch EdgeResponse)."""
    B, C, H, W = images.shape
    budget, vmem_limit = _vmem_policy()
    bb = _pick_batch_block(B, C, H, W, images.dtype.itemsize, budget)
    grid = (B // bb, C)

    kernel = functools.partial(_edge_response_kernel, H=H, W=W, bb=bb)
    out = pl.pallas_call(
        kernel,
        out_shape=jax.ShapeDtypeStruct((B, H, W), images.dtype),
        grid=grid,
        in_specs=[
            # One channel of `bb` batch elements per step; the channel dim is
            # squeezed so the kernel sees (bb, H, W) with H on sublanes and W
            # on lanes.  The BlockSpec DMA handles the channel stride -- no
            # in-kernel strided gather.
            pl.BlockSpec((bb, None, H, W), lambda i, c: (i, c, 0, 0)),
        ],
        # Output block index is independent of c -> stays VMEM-resident across
        # the channel ("arbitrary") reduction axis; written once at c == C-1.
        out_specs=pl.BlockSpec((bb, H, W), lambda i, c: (i, 0, 0)),
        scratch_shapes=[pltpu.VMEM((bb, H, W), jnp.float32)],
        compiler_params=pltpu.CompilerParams(
            dimension_semantics=("parallel", "arbitrary"),
            vmem_limit_bytes=vmem_limit,
        ),
    )(images)
    return out


def edge_response_ref(images):
    """Pure-JAX reference mirroring the PyTorch forward (padded 3x3 unfold)."""
    B, C, H, W = images.shape
    xpad = jnp.pad(images, ((0, 0), (0, 0), (1, 1), (1, 1)))
    out = jnp.zeros((B, H, W), dtype=jnp.float32)
    for dy in range(3):
        for dx in range(3):
            patch = xpad[:, :, dy:dy + H, dx:dx + W]
            diff = jnp.where(patch > 0.0, jnp.abs(patch - images), 0.0)
            out = out + jnp.sum(diff.astype(jnp.float32), axis=1)
    return out.astype(images.dtype)


if __name__ == "__main__":
    # Small shapes consistent with the module: image_size=16, batch=2, channels=4.
    B, C, H, W = 2, 4, 16, 16
    key = jax.random.PRNGKey(0)
    images = jax.random.normal(key, (B, C, H, W), dtype=jnp.float32)

    out = jax.block_until_ready(edge_response(images))
    ref = edge_response_ref(images)

    assert out.shape == (B, H, W)
    assert jnp.allclose(out, ref, atol=1e-4, rtol=1e-4), "mismatch vs reference"

    print("KERNEL_OK")
</pallas_src>

<mosaic_0001>
module attributes {stable_mosaic.version = 11 : i64} {
  func.func @_edge_response_kernel(%arg0: i32, %arg1: i32, %arg2: memref<1x1x16x16xf32, #tpu.memory_space<vmem>>, %arg3: memref<1x16x16xf32, #tpu.memory_space<vmem>>, %arg4: memref<1x16x16xf32, #tpu.memory_space<vmem>>) attributes {dimension_semantics = [#tpu.dimension_semantics<parallel>, #tpu.dimension_semantics<arbitrary>], iteration_bounds = array<i64: 2, 4>, scalar_prefetch = 0 : i64, scratch_operands = 1 : i64, tpu.core_type = #tpu.core_type<tc>, window_params = [{transform_indices = @transform_0, window_bounds = array<i64: 1, 1, 16, 16>}, {transform_indices = @transform_1, window_bounds = array<i64: 1, 16, 16>}]} {
    %c0_i32 = arith.constant 0 : i32
    %0 = arith.cmpi eq, %arg1, %c0_i32 : i32
    %1 = arith.extui %0 : i1 to i32
    %c0_i32_0 = arith.constant 0 : i32
    %2 = arith.cmpi ne, %1, %c0_i32_0 : i32
    scf.if %2 {
      %cst_37 = arith.constant 0.000000e+00 : f32
      %97 = vector.broadcast %cst_37 : f32 to vector<1x16x16xf32>
      %c0_38 = arith.constant 0 : index
      %c0_39 = arith.constant 0 : index
      %c0_40 = arith.constant 0 : index
      %98 = vector.load %arg4[%c0_38, %c0_39, %c0_40] : memref<1x16x16xf32, #tpu.memory_space<vmem>>, vector<1x16x16xf32>
      tpu.vector_store %arg4[%c0_38, %c0_39, %c0_40], %97 {strides = array<i32>} : memref<1x16x16xf32, #tpu.memory_space<vmem>>, vector<1x16x16xf32>,
    } else {
    }
    %3 = tpu.iota {dimensions = array<i32: 0>} : vector<16x16xi32>
    %4 = tpu.iota {dimensions = array<i32: 1>} : vector<16x16xi32>
    %c1_i32 = arith.constant 1 : i32
    %5 = vector.broadcast %c1_i32 : i32 to vector<16x16xi32>
    %6 = arith.cmpi sge, %3, %5 : vector<16x16xi32>
    %c14_i32 = arith.constant 14 : i32
    %7 = vector.broadcast %c14_i32 : i32 to vector<16x16xi32>
    %8 = arith.cmpi sle, %3, %7 : vector<16x16xi32>
    %c1_i32_1 = arith.constant 1 : i32
    %9 = vector.broadcast %c1_i32_1 : i32 to vector<16x16xi32>
    %10 = arith.cmpi sge, %4, %9 : vector<16x16xi32>
    %c14_i32_2 = arith.constant 14 : i32
    %11 = vector.broadcast %c14_i32_2 : i32 to vector<16x16xi32>
    %12 = arith.cmpi sle, %4, %11 : vector<16x16xi32>
    %c0 = arith.constant 0 : index
    %c0_3 = arith.constant 0 : index
    %c0_4 = arith.constant 0 : index
    %c0_5 = arith.constant 0 : index
    %13 = vector.load %arg2[%c0, %c0_3, %c0_4, %c0_5] : memref<1x1x16x16xf32, #tpu.memory_space<vmem>>, vector<1x1x16x16xf32>
    %14 = vector.shape_cast %13 : vector<1x1x16x16xf32> to vector<16x16xf32>
    %c15_i32 = arith.constant 15 : i32
    %15 = tpu.dynamic_rotate %14 by %c15_i32 dim 0 : vector<16x16xf32>, i32 -> vector<16x16xf32>
    %cst = arith.constant 0.000000e+00 : f32
    %16 = vector.broadcast %cst : f32 to vector<16x16xf32>
    %17 = arith.select %8, %15, %16 : vector<16x16xi1>, vector<16x16xf32>
    %c1_i32_6 = arith.constant 1 : i32
    %18 = tpu.dynamic_rotate %14 by %c1_i32_6 dim 0 : vector<16x16xf32>, i32 -> vector<16x16xf32>
    %cst_7 = arith.constant 0.000000e+00 : f32
    %19 = vector.broadcast %cst_7 : f32 to vector<16x16xf32>
    %20 = arith.select %6, %18, %19 : vector<16x16xi1>, vector<16x16xf32>
    %cst_8 = arith.constant 0.000000e+00 : f32
    %21 = vector.broadcast %cst_8 : f32 to vector<16x16xf32>
    %22 = arith.cmpf ogt, %17, %21 : vector<16x16xf32>
    %23 = arith.subf %17, %14 : vector<16x16xf32>
    %24 = math.absf %23 : vector<16x16xf32>
    %cst_9 = arith.constant 0.000000e+00 : f32
    %25 = vector.broadcast %cst_9 : f32 to vector<16x16xf32>
    %26 = arith.select %22, %24, %25 : vector<16x16xi1>, vector<16x16xf32>
    %cst_10 = arith.constant 0.000000e+00 : f32
    %27 = vector.broadcast %cst_10 : f32 to vector<16x16xf32>
    %28 = arith.cmpf ogt, %20, %27 : vector<16x16xf32>
    %29 = arith.subf %20, %14 : vector<16x16xf32>
    %30 = math.absf %29 : vector<16x16xf32>
    %cst_11 = arith.constant 0.000000e+00 : f32
    %31 = vector.broadcast %cst_11 : f32 to vector<16x16xf32>
    %32 = arith.select %28, %30, %31 : vector<16x16xi1>, vector<16x16xf32>
    %33 = arith.addf %26, %32 : vector<16x16xf32>
    %c15_i32_12 = arith.constant 15 : i32
    %34 = tpu.dynamic_rotate %14 by %c15_i32_12 dim 1 : vector<16x16xf32>, i32 -> vector<16x16xf32>
    %cst_13 = arith.constant 0.000000e+00 : f32
    %35 = vector.broadcast %cst_13 : f32 to vector<16x16xf32>
    %36 = arith.cmpf ogt, %34, %35 : vector<16x16xf32>
    %37 = arith.andi %36, %12 : vector<16x16xi1>
    %38 = arith.subf %34, %14 : vector<16x16xf32>
    %39 = math.absf %38 : vector<16x16xf32>
    %cst_14 = arith.constant 0.000000e+00 : f32
    %40 = vector.broadcast %cst_14 : f32 to vector<16x16xf32>
    %41 = arith.select %37, %39, %40 : vector<16x16xi1>, vector<16x16xf32>
    %42 = arith.addf %33, %41 : vector<16x16xf32>
    %c1_i32_15 = arith.constant 1 : i32
    %43 = tpu.dynamic_rotate %14 by %c1_i32_15 dim 1 : vector<16x16xf32>, i32 -> vector<16x16xf32>
    %cst_16 = arith.constant 0.000000e+00 : f32
    %44 = vector.broadcast %cst_16 : f32 to vector<16x16xf32>
    %45 = arith.cmpf ogt, %43, %44 : vector<16x16xf32>
    %46 = arith.andi %45, %10 : vector<16x16xi1>
    %47 = arith.subf %43, %14 : vector<16x16xf32>
    %48 = math.absf %47 : vector<16x16xf32>
    %cst_17 = arith.constant 0.000000e+00 : f32
    %49 = vector.broadcast %cst_17 : f32 to vector<16x16xf32>
    %50 = arith.select %46, %48, %49 : vector<16x16xi1>, vector<16x16xf32>
    %51 = arith.addf %42, %50 : vector<16x16xf32>
    %c15_i32_18 = arith.constant 15 : i32
    %52 = tpu.dynamic_rotate %17 by %c15_i32_18 dim 1 : vector<16x16xf32>, i32 -> vector<16x16xf32>
    %cst_19 = arith.constant 0.000000e+00 : f32
    %53 = vector.broadcast %cst_19 : f32 to vector<16x16xf32>
    %54 = arith.cmpf ogt, %52, %53 : vector<16x16xf32>
    %55 = arith.andi %54, %12 : vector<16x16xi1>
    %56 = arith.subf %52, %14 : vector<16x16xf32>
    %57 = math.absf %56 : vector<16x16xf32>
    %cst_20 = arith.constant 0.000000e+00 : f32
    %58 = vector.broadcast %cst_20 : f32 to vector<16x16xf32>
    %59 = arith.select %55, %57, %58 : vector<16x16xi1>, vector<16x16xf32>
    %60 = arith.addf %51, %59 : vector<16x16xf32>
    %c1_i32_21 = arith.constant 1 : i32
    %61 = tpu.dynamic_rotate %17 by %c1_i32_21 dim 1 : vector<16x16xf32>, i32 -> vector<16x16xf32>
    %cst_22 = arith.constant 0.000000e+00 : f32
    %62 = vector.broadcast %cst_22 : f32 to vector<16x16xf32>
    %63 = arith.cmpf ogt, %61, %62 : vector<16x16xf32>
    %64 = arith.andi %63, %10 : vector<16x16xi1>
    %65 = arith.subf %61, %14 : vector<16x16xf32>
    %66 = math.absf %65 : vector<16x16xf32>
    %cst_23 = arith.constant 0.000000e+00 : f32
    %67 = vector.broadcast %cst_23 : f32 to vector<16x16xf32>
    %68 = arith.select %64, %66, %67 : vector<16x16xi1>, vector<16x16xf32>
    %69 = arith.addf %60, %68 : vector<16x16xf32>
    %c15_i32_24 = arith.constant 15 : i32
    %70 = tpu.dynamic_rotate %20 by %c15_i32_24 dim 1 : vector<16x16xf32>, i32 -> vector<16x16xf32>
    %cst_25 = arith.constant 0.000000e+00 : f32
    %71 = vector.broadcast %cst_25 : f32 to vector<16x16xf32>
    %72 = arith.cmpf ogt, %70, %71 : vector<16x16xf32>
    %73 = arith.andi %72, %12 : vector<16x16xi1>
    %74 = arith.subf %70, %14 : vector<16x16xf32>
    %75 = math.absf %74 : vector<16x16xf32>
    %cst_26 = arith.constant 0.000000e+00 : f32
    %76 = vector.broadcast %cst_26 : f32 to vector<16x16xf32>
    %77 = arith.select %73, %75, %76 : vector<16x16xi1>, vector<16x16xf32>
    %78 = arith.addf %69, %77 : vector<16x16xf32>
    %c1_i32_27 = arith.constant 1 : i32
    %79 = tpu.dynamic_rotate %20 by %c1_i32_27 dim 1 : vector<16x16xf32>, i32 -> vector<16x16xf32>
    %cst_28 = arith.constant 0.000000e+00 : f32
    %80 = vector.broadcast %cst_28 : f32 to vector<16x16xf32>
    %81 = arith.cmpf ogt, %79, %80 : vector<16x16xf32>
    %82 = arith.andi %81, %10 : vector<16x16xi1>
    %83 = arith.subf %79, %14 : vector<16x16xf32>
    %84 = math.absf %83 : vector<16x16xf32>
    %cst_29 = arith.constant 0.000000e+00 : f32
    %85 = vector.broadcast %cst_29 : f32 to vector<16x16xf32>
    %86 = arith.select %82, %84, %85 : vector<16x16xi1>, vector<16x16xf32>
    %87 = arith.addf %78, %86 : vector<16x16xf32>
    %c0_30 = arith.constant 0 : index
    %c0_31 = arith.constant 0 : index
    %c0_32 = arith.constant 0 : index
    %88 = vector.load %arg4[%c0_30, %c0_31, %c0_32] : memref<1x16x16xf32, #tpu.memory_space<vmem>>, vector<1x16x16xf32>
    %89 = vector.shape_cast %88 : vector<1x16x16xf32> to vector<16x16xf32>
    %90 = arith.addf %89, %87 : vector<16x16xf32>
    %c0_33 = arith.constant 0 : index
    %c0_34 = arith.constant 0 : index
    %c0_35 = arith.constant 0 : index
    %91 = vector.load %arg4[%c0_33, %c0_34, %c0_35] : memref<1x16x16xf32, #tpu.memory_space<vmem>>, vector<1x16x16xf32>
    %92 = vector.shape_cast %91 : vector<1x16x16xf32> to vector<16x16xf32>
    %93 = vector.shape_cast %90 : vector<16x16xf32> to vector<1x16x16xf32>
    tpu.vector_store %arg4[%c0_33, %c0_34, %c0_35], %93 {strides = array<i32>} : memref<1x16x16xf32, #tpu.memory_space<vmem>>, vector<1x16x16xf32>,
    %c3_i32 = arith.constant 3 : i32
    %94 = arith.cmpi eq, %arg1, %c3_i32 : i32
    %95 = arith.extui %94 : i1 to i32
    %c0_i32_36 = arith.constant 0 : i32
    %96 = arith.cmpi ne, %95, %c0_i32_36 : i32
    scf.if %96 {
      %c0_37 = arith.constant 0 : index
      %c0_38 = arith.constant 0 : index
      %c0_39 = arith.constant 0 : index
      %97 = vector.load %arg4[%c0_37, %c0_38, %c0_39] : memref<1x16x16xf32, #tpu.memory_space<vmem>>, vector<1x16x16xf32>
      %c0_40 = arith.constant 0 : index
      %c0_41 = arith.constant 0 : index
      %c0_42 = arith.constant 0 : index
      %98 = vector.load %arg3[%c0_40, %c0_41, %c0_42] : memref<1x16x16xf32, #tpu.memory_space<vmem>>, vector<1x16x16xf32>
      tpu.vector_store %arg3[%c0_40, %c0_41, %c0_42], %97 {strides = array<i32>} : memref<1x16x16xf32, #tpu.memory_space<vmem>>, vector<1x16x16xf32>,
    } else {
    }
    return
  }
  func.func @transform_0(%arg0: i32, %arg1: i32) -> (i32, i32, i32, i32) {
    %c0_i32 = arith.constant 0 : i32
    %c0_i32_0 = arith.constant 0 : i32
    %c0_i32_1 = arith.constant 0 : i32
    return %arg0, %arg1, %c0_i32, %c0_i32_0 : i32, i32, i32, i32
  }
  func.func @transform_1(%arg0: i32, %arg1: i32) -> (i32, i32, i32) {
    %c0_i32 = arith.constant 0 : i32
    %c0_i32_0 = arith.constant 0 : i32
    %c0_i32_1 = arith.constant 0 : i32
    return %arg0, %c0_i32, %c0_i32_0 : i32, i32, i32
  }
}

</mosaic_0001>

<llo_original>
// kernel: tpu_custom_call.1
$region0: #{tpu_custom_call.1}
  #allocation0 [shape = 'u32[]', space=smem, size = 0x4, offset = 0x4, fixed_abs, tag = 'smem constant byte address 0x4 - core index']
  #allocation1 [shape = 'u32[144,128]{1,0:T(1,128)}', space=vmem, size = 0x12000, scoped, tag = 'internal scratch']
  #allocation2 [shape = 'f32[1,16,16]{2,1,0:T(8,128)}', space=vmem, size = 0x2000, scoped, tag = 'scratch operand']
  %s0 = inlined_call_operand.hbm [shape: f32[2,4,16,16], index: 0, kind: input, shape index: {}]
  %s1 = inlined_call_operand.hbm [shape: f32[2,16,16], index: 1, kind: output, shape index: {}]
  %s2 = sld [smem:[#allocation0]]
  $region49: #{tpu_custom_call.1} parent=0
    _
  %s4 = ssub.s32 1, %s2
  %s5 = scalar_select 0, %s4, %s2
  $region1: #{tpu_custom_call.1} parent=0
    #allocation3 [shape = 'u8[16384]{0}', space=vmem, size = 0x4000, scoped, tag = 'input window, operand 0']
    #allocation4 [shape = 's32[2]{0}', space=sflag, size = 0x8, scoped, tag = 'scoped memory for tpu_custom_call.1']
    #allocation5 [shape = 's32[2]{0}', space=sflag, size = 0x8, scoped, tag = 'scoped memory for tpu_custom_call.1']
    #allocation6 [shape = 'u8[16384]{0}', space=vmem, size = 0x4000, scoped, tag = 'output window, operand 0']
    %6 = vsyncpa [#allocation4], 0
    %s7 = scalar_lea.sflag [#allocation4], 1
    %8 = vsyncpa %s7, 0
    %9 = vsyncpa [#allocation5], 0
    %s10 = scalar_lea.sflag [#allocation5], 1
    %11 = vsyncpa %s10, 0
    loop: start=0, step=1, limit=10
    $region2: #{tpu_custom_call.1} parent=1 // loop_pre_header
      _
    $region3: #{tpu_custom_call.1} parent=1 // loop_header
      %s13 = sphi 0, %s17
      %p14 = scmp.ge.s32.totalorder %s13, 10
      %s20 = sphi 0, %s32
      %s21 = sphi 0, %s28
      %s22 = sphi 0, %s20
      %s23 = sphi 0, %s21
      %s24 = sphi 0, %s22
      %s25 = sphi 0, %s23
      %s37 = sphi 0, %s39
      %s40 = sphi 0, %s37
      %s41 = sphi 0, %s40
      %s57 = sphi 0, %s41
      %s63 = sphi 0, %s65
      %s66 = sphi 0, %s63
      %s67 = sphi 0, %s66
      %s83 = sphi 0, %s67
    $region4: #{tpu_custom_call.1} parent=1 // loop_header_branch
      %16 = sbr.rel (%p14) target = $region8
    $region5: #{tpu_custom_call.1} parent=1 // loop_body
      %s18 = ssub.s32 %s13, 1
      %s19 = ssub.s32 %s13, 2
      %s26 = sadd.s32 1, %s21
      %p27 = scmp.ge.s32.totalorder %s26, 4
      %s28 = scalar_select %p27, 0, %s26
      %s29 = sadd.s32 1, %s20
      %s30 = scalar_select %p27, %s29, %s20
      %p31 = scmp.ge.s32.totalorder %s30, 2
      %s32 = scalar_select %p31, 0, %s30
      %s33 = ssub.s32 %s20, %s32
      %s34 = ssub.s32 %s21, %s28
      %s35 = sor.u32 %s33, %s34
      %p36 = scmp.eq.s32.totalorder %s35, 0
      %s38 = sadd.s32 %s37, 1
      %s39 = scalar_select %p36, %s37, %s38
      %p42 = pneg %p36
      %p43 = scmp.eq.s32.totalorder %s13, 7
      %p44 = por %p42, %p43
      %p45 = scmp.ne.s32.totalorder %s37, %s40
      %p46 = scmp.eq.s32.totalorder %s13, 0
      %p47 = por %p45, %p46
      %p48 = scmp.ne.s32.totalorder %s37, %s40
      %p49 = scmp.eq.s32.totalorder %s18, 7
      %p50 = por %p48, %p49
      %p51 = scmp.ne.s32.totalorder %s40, %s41
      %p52 = scmp.eq.s32.totalorder %s18, 0
      %p53 = por %p51, %p52
      %p54 = scmp.ne.s32.totalorder %s40, %s41
      %p55 = scmp.eq.s32.totalorder %s19, 7
      %p56 = por %p54, %p55
      %p58 = scmp.ne.s32.totalorder %s41, %s57
      %p59 = scmp.eq.s32.totalorder %s19, 0
      %p60 = por %p58, %p59
      %s61 = ssub.s32 %s20, %s32
      %p62 = scmp.eq.s32.totalorder %s61, 0
      %s64 = sadd.s32 %s63, 1
      %s65 = scalar_select %p62, %s63, %s64
      %p68 = pneg %p62
      %p69 = scmp.eq.s32.totalorder %s13, 7
      %p70 = por %p68, %p69
      %p71 = scmp.ne.s32.totalorder %s63, %s66
      %p72 = scmp.eq.s32.totalorder %s13, 0
      %p73 = por %p71, %p72
      %p74 = scmp.ne.s32.totalorder %s63, %s66
      %p75 = scmp.eq.s32.totalorder %s18, 7
      %p76 = por %p74, %p75
      %p77 = scmp.ne.s32.totalorder %s66, %s67
      %p78 = scmp.eq.s32.totalorder %s18, 0
      %p79 = por %p77, %p78
      %p80 = scmp.ne.s32.totalorder %s66, %s67
      %p81 = scmp.eq.s32.totalorder %s19, 7
      %p82 = por %p80, %p81
      %p84 = scmp.ne.s32.totalorder %s67, %s83
      %p85 = scmp.eq.s32.totalorder %s19, 0
      %p86 = por %p84, %p85
      %p87 = scmp.le.s32.totalorder 1, %s13
      %p88 = scmp.lt.s32.totalorder %s13, 9
      %p89 = pnand %p87, %p88
      %p90 = pneg %p89
      // Predicated region
      $region9: #{tpu_custom_call.1} parent=5 // pred_check
        _
      $region10: #{tpu_custom_call.1} parent=5 // pred_check_branch
        %92 = sbr.rel (%p89) target = $region12
      $region11: #{tpu_custom_call.1} parent=5 // pred_region
        %s93 = ssub.s32 %s13, 1
      $region12: #{tpu_custom_call.1} parent=5 // pred_fallthru
        _
      %p94 = scmp.lt.s32.totalorder %s13, 8
      // Predicated region
      $region13: #{tpu_custom_call.1} parent=5 // pred_check
        %p95 = pneg %p94
      $region14: #{tpu_custom_call.1} parent=5 // pred_check_branch
        %97 = sbr.rel (%p95) target = $region16
      $region15: #{tpu_custom_call.1} parent=5 // pred_region
        // Predicated region
        $region17: #{tpu_custom_call.1} parent=15 // pred_check
          %p98 = pneg %p47
        $region18: #{tpu_custom_call.1} parent=15 // pred_check_branch
          %100 = sbr.rel (%p98) target = $region20
        $region19: #{tpu_custom_call.1} parent=15 // pred_region
          %s101 = sand.u32 %s37, 1
          %s102 = scalar_lea.sflag [#allocation4], %s101
          %s103 = sand.u32 %s37, 1
          %s104 = smul.addr %s103, 16
          %s105 = scalar_lea.vmem [#allocation3], %s104
          %s107 = ssub.s32 256, 256
          %108 = vsyncadd %s102, %s107
          %s109 = smul.addr %s21, 2
          %s110 = smul.addr %s20, 8
          %s111 = sadd.s32 %s109, %s110
          %s112 = smul.addr %s111, 128
          %s113 = scalar_lea.hbm %s0, %s112
          %s114 = sshll.u32 %s105, 4
          %s115 = int_to_ptr.vmem [resolvable:$true] %s114
          %120 = dma.hbm_to_vmem [thread:$0]  %s113, 256, %s115, %s102, 128, 128, 8
        $region20: #{tpu_custom_call.1} parent=15 // pred_fallthru
          _
      $region16: #{tpu_custom_call.1} parent=5 // pred_fallthru
        _
      %p121 = scmp.le.s32.totalorder 1, %s13
      %p122 = scmp.lt.s32.totalorder %s13, 9
      %p123 = pnand %p121, %p122
      %p124 = pneg %p123
      // Predicated region
      $region21: #{tpu_custom_call.1} parent=5 // pred_check
        _
      $region22: #{tpu_custom_call.1} parent=5 // pred_check_branch
        %126 = sbr.rel (%p123) target = $region24
      $region23: #{tpu_custom_call.1} parent=5 // pred_region
        %s127 = ssub.s32 %s13, 1
        %s128 = sand.u32 %s40, 1
        %s129 = scalar_lea.sflag [#allocation4], %s128
        %s130 = sand.u32 %s40, 1
        %s131 = smul.addr %s130, 16
        %s132 = scalar_lea.vmem [#allocation3], %s131
        // Predicated region
        $region25: #{tpu_custom_call.1} parent=23 // pred_check
          %p133 = pneg %p53
        $region26: #{tpu_custom_call.1} parent=23 // pred_check_branch
          %135 = sbr.rel (%p133) target = $region28
        $region27: #{tpu_custom_call.1} parent=23 // pred_region
          %136 = dma.done %s129, 256
        $region28: #{tpu_custom_call.1} parent=23 // pred_fallthru
          _
        %s137 = sand.u32 %s40, 1
        %s138 = scalar_lea.sflag [#allocation4], %s137
        %s139 = sand.u32 %s40, 1
        %s140 = smul.addr %s139, 16
        %s141 = scalar_lea.vmem [#allocation3], %s140
        %p142 = pneg %p53
        %p143 = pneg %p50
        %p144 = pneg %p79
        %p145 = pneg %p76
        %s146 = sand.u32 %s66, 1
        %s147 = scalar_lea.sflag [#allocation5], %s146
        %s148 = sand.u32 %s66, 1
        %s149 = smul.addr %s148, 16
        %s150 = scalar_lea.vmem [#allocation6], %s149
        %p151 = scmp.eq.s32.totalorder %s23, 0
        // Predicated region
        $region29: #{tpu_custom_call.1} parent=23 // pred_check
          %p152 = pneg %p151
        $region30: #{tpu_custom_call.1} parent=23 // pred_check_branch
          %154 = sbr.rel (%p152) target = $region32
        $region31: #{tpu_custom_call.1} parent=23 // pred_region
          %vm155 = vcmask 130048
          %156 = vst.msk [vmem:[#allocation2] sm:$0xff] %vm155, 0.0
          %157 = vst.msk [vmem:[#allocation2 + $0x8] sm:$0xff] %vm155, 0.0
        $region32: #{tpu_custom_call.1} parent=23 // pred_fallthru
          _
        %v158 = vlaneseq
        %v159 = vshrl.u32 %v158, 7
        %v160 = vadd.s32 %v159, 8
        %v161 = vlaneseq
        %v162 = vand.u32 %v161, 127
        %vm163 = vcmp.ge.s32.totalorder %v159, 1
        %vm164 = vcmp.ge.s32.totalorder %v160, 1
        %vm165 = vcmp.le.s32.totalorder %v159, 14
        %vm166 = vcmp.le.s32.totalorder %v160, 14
        %vm167 = vcmp.ge.s32.totalorder %v162, 1
        %vm168 = vcmp.le.s32.totalorder %v162, 14
        %v169 = vld [vmem:[%s132] sm:$0xff]
        %v170 = vld [vmem:[%s132 + $0x8] sm:$0xff]
        %v171 = vrot.slane %v169, 1
        %v172 = vrot.slane %v170, 1
        %vm173 = vcmp.lt.s32.totalorder %v159, 7
        %v174 = vsel %vm173, %v171, %v172
        %v175 = vsel %vm173, %v172, %v171
        %v176 = vsel %vm165, %v174, 0.0
        %v177 = vsel %vm166, %v175, 0.0
        %v178 = vrot.slane %v169, 7
        %v179 = vrot.slane %v170, 7
        %vm180 = vcmp.lt.s32.totalorder %v159, 1
        %v181 = vsel %vm180, %v178, %v179
        %v182 = vsel %vm180, %v179, %v178
        %v183 = vsel %vm163, %v182, 0.0
        %v184 = vsel %vm164, %v181, 0.0
        %vm185 = vcmp.gt.f32.partialorder %v176, 0.0
        %vm186 = vcmp.gt.f32.partialorder %v177, 0.0
        %v187 = vsub.f32 %v176, %v169
        %v188 = vsub.f32 %v177, %v170
        %v189 = vand.u32 2147483647, %v187
        %v190 = vand.u32 2147483647, %v188
        %v191 = vsel %vm185, %v189, 0.0
        %v192 = vsel %vm186, %v190, 0.0
        %vm193 = vcmp.gt.f32.partialorder %v183, 0.0
        %vm194 = vcmp.gt.f32.partialorder %v184, 0.0
        %v195 = vsub.f32 %v183, %v169
        %v196 = vsub.f32 %v184, %v170
        %v197 = vand.u32 2147483647, %v195
        %v198 = vand.u32 2147483647, %v196
        %v199 = vsel %vm193, %v197, 0.0
        %v200 = vsel %vm194, %v198, 0.0
        %v201 = vadd.f32 %v191, %v199
        %v202 = vadd.f32 %v192, %v200
        %vm203 = vcmask 1047680
        %204 = vrot.lane.b32.xlu0 %v169, 16
        %v205 = vpop.permute.xlu0 %204
        %v206 = vsel %vm203, %v205, %v169
        %207 = vrot.lane.b32.xlu0 %v170, 16
        %v208 = vpop.permute.xlu0 %207
        %v209 = vsel %vm203, %v208, %v170
        %210 = vrot.lane.b32.xlu0 %v206, 16
        %v211 = vpop.permute.xlu0 %210
        %212 = vrot.lane.b32.xlu0 %v209, 16
        %v213 = vpop.permute.xlu0 %212
        %v214 = vsel %vm203, %v211, %v169
        %v215 = vsel %vm203, %v213, %v170
        %vm216 = vcmp.gt.f32.partialorder %v214, 0.0
        %vm217 = vcmp.gt.f32.partialorder %v215, 0.0
        %v218 = vsel %vm168, 1, 0
        %219 = vrot.lane.b32.xlu0 %v218, 1
        %v220 = vpop.permute.xlu0 %219
        %vm221 = vcmp.ne.s32.totalorder %v220, 0
        %vm222 = vmand %vm216, %vm221
        %vm223 = vmand %vm217, %vm221
        %226 = vrot.lane.b32.xlu0 %v169, 1
        %v227 = vpop.permute.xlu0 %226
        %228 = vrot.lane.b32.xlu0 %v170, 1
        %v229 = vpop.permute.xlu0 %228
        %v232 = vsub.f32 %v214, %v227
        %v233 = vsub.f32 %v215, %v229
        %v234 = vand.u32 2147483647, %v232
        %v235 = vand.u32 2147483647, %v233
        %v236 = vsel %vm222, %v234, 0.0
        %v237 = vsel %vm223, %v235, 0.0
        %240 = vrot.lane.b32.xlu0 %v236, 127
        %v241 = vpop.permute.xlu0 %240
        %242 = vrot.lane.b32.xlu0 %v237, 127
        %v243 = vpop.permute.xlu0 %242
        %v246 = vadd.f32 %v201, %v241
        %v247 = vadd.f32 %v202, %v243
        %v248 = vsel %vm167, 1, 0
        %249 = vrot.lane.b32.xlu0 %v248, 15
        %v250 = vpop.permute.xlu0 %249
        %vm251 = vcmp.ne.s32.totalorder %v250, 0
        %vm252 = vmand %vm216, %vm251
        %vm253 = vmand %vm217, %vm251
        %254 = vrot.lane.b32.xlu0 %v169, 15
        %v255 = vpop.permute.xlu0 %254
        %256 = vrot.lane.b32.xlu0 %v170, 15
        %v257 = vpop.permute.xlu0 %256
        %v260 = vsub.f32 %v214, %v255
        %v261 = vsub.f32 %v215, %v257
        %v262 = vand.u32 2147483647, %v260
        %v263 = vand.u32 2147483647, %v261
        %v264 = vsel %vm252, %v262, 0.0
        %v265 = vsel %vm253, %v263, 0.0
        %268 = vrot.lane.b32.xlu0 %v264, 113
        %v269 = vpop.permute.xlu0 %268
        %270 = vrot.lane.b32.xlu0 %v265, 113
        %v271 = vpop.permute.xlu0 %270
        %v274 = vadd.f32 %v246, %v269
        %v275 = vadd.f32 %v247, %v271
        %276 = vrot.lane.b32.xlu0 %v176, 16
        %v277 = vpop.permute.xlu0 %276
        %v278 = vsel %vm203, %v277, %v176
        %279 = vrot.lane.b32.xlu0 %v177, 16
        %v280 = vpop.permute.xlu0 %279
        %v281 = vsel %vm203, %v280, %v177
        %282 = vrot.lane.b32.xlu0 %v278, 16
        %v283 = vpop.permute.xlu0 %282
        %284 = vrot.lane.b32.xlu0 %v281, 16
        %v285 = vpop.permute.xlu0 %284
        %v286 = vsel %vm203, %v283, %v176
        %v287 = vsel %vm203, %v285, %v177
        %vm288 = vcmp.gt.f32.partialorder %v286, 0.0
        %vm289 = vcmp.gt.f32.partialorder %v287, 0.0
        %vm290 = vmand %vm288, %vm221
        %vm291 = vmand %vm289, %vm221
        %v292 = vsub.f32 %v286, %v227
        %v293 = vsub.f32 %v287, %v229
        %v294 = vand.u32 2147483647, %v292
        %v295 = vand.u32 2147483647, %v293
        %v296 = vsel %vm290, %v294, 0.0
        %v297 = vsel %vm291, %v295, 0.0
        %300 = vrot.lane.b32.xlu0 %v296, 127
        %v301 = vpop.permute.xlu0 %300
        %302 = vrot.lane.b32.xlu0 %v297, 127
        %v303 = vpop.permute.xlu0 %302
        %v306 = vadd.f32 %v274, %v301
        %v307 = vadd.f32 %v275, %v303
        %vm308 = vmand %vm288, %vm251
        %vm309 = vmand %vm289, %vm251
        %v310 = vsub.f32 %v286, %v255
        %v311 = vsub.f32 %v287, %v257
        %v312 = vand.u32 2147483647, %v310
        %v313 = vand.u32 2147483647, %v311
        %v314 = vsel %vm308, %v312, 0.0
        %v315 = vsel %vm309, %v313, 0.0
        %318 = vrot.lane.b32.xlu0 %v314, 113
        %v319 = vpop.permute.xlu0 %318
        %320 = vrot.lane.b32.xlu0 %v315, 113
        %v321 = vpop.permute.xlu0 %320
        %v324 = vadd.f32 %v306, %v319
        %v325 = vadd.f32 %v307, %v321
        %326 = vrot.lane.b32.xlu0 %v183, 16
        %v327 = vpop.permute.xlu0 %326
        %v328 = vsel %vm203, %v327, %v183
        %329 = vrot.lane.b32.xlu0 %v184, 16
        %v330 = vpop.permute.xlu0 %329
        %v331 = vsel %vm203, %v330, %v184
        %332 = vrot.lane.b32.xlu0 %v328, 16
        %v333 = vpop.permute.xlu0 %332
        %334 = vrot.lane.b32.xlu0 %v331, 16
        %v335 = vpop.permute.xlu0 %334
        %v336 = vsel %vm203, %v333, %v183
        %v337 = vsel %vm203, %v335, %v184
        %vm338 = vcmp.gt.f32.partialorder %v336, 0.0
        %vm339 = vcmp.gt.f32.partialorder %v337, 0.0
        %vm340 = vmand %vm338, %vm221
        %vm341 = vmand %vm339, %vm221
        %v342 = vsub.f32 %v336, %v227
        %v343 = vsub.f32 %v337, %v229
        %v344 = vand.u32 2147483647, %v342
        %v345 = vand.u32 2147483647, %v343
        %v346 = vsel %vm340, %v344, 0.0
        %v347 = vsel %vm341, %v345, 0.0
        %350 = vrot.lane.b32.xlu0 %v346, 127
        %v351 = vpop.permute.xlu0 %350
        %352 = vrot.lane.b32.xlu0 %v347, 127
        %v353 = vpop.permute.xlu0 %352
        %v356 = vadd.f32 %v324, %v351
        %v357 = vadd.f32 %v325, %v353
        %vm358 = vmand %vm338, %vm251
        %vm359 = vmand %vm339, %vm251
        %v360 = vsub.f32 %v336, %v255
        %v361 = vsub.f32 %v337, %v257
        %v362 = vand.u32 2147483647, %v360
        %v363 = vand.u32 2147483647, %v361
        %v364 = vsel %vm358, %v362, 0.0
        %v365 = vsel %vm359, %v363, 0.0
        %368 = vrot.lane.b32.xlu0 %v364, 113
        %v369 = vpop.permute.xlu0 %368
        %370 = vrot.lane.b32.xlu0 %v365, 113
        %v371 = vpop.permute.xlu0 %370
        %v374 = vadd.f32 %v356, %v369
        %v375 = vadd.f32 %v357, %v371
        %v376 = vld [vmem:[#allocation2] sm:$0xff]
        %v377 = vld [vmem:[#allocation2 + $0x8] sm:$0xff]
        %v378 = vadd.f32 %v376, %v374
        %v379 = vadd.f32 %v377, %v375
        %vm380 = vcmask 130048
        %381 = vst.msk [vmem:[#allocation2] sm:$0xff] %vm380, %v378
        %382 = vst.msk [vmem:[#allocation2 + $0x8] sm:$0xff] %vm380, %v379
        %p383 = scmp.eq.s32.totalorder %s23, 3
        // Predicated region
        $region33: #{tpu_custom_call.1} parent=23 // pred_check
          %p384 = pneg %p383
        $region34: #{tpu_custom_call.1} parent=23 // pred_check_branch
          %386 = sbr.rel (%p384) target = $region36
        $region35: #{tpu_custom_call.1} parent=23 // pred_region
          %v387 = vld [vmem:[#allocation2] sm:$0xff]
          %v388 = vld [vmem:[#allocation2 + $0x8] sm:$0xff]
          %389 = vst.msk [vmem:[%s150] sm:$0xff] %vm380, %v387
          %390 = vst.msk [vmem:[%s150 + $0x8] sm:$0xff] %vm380, %v388
        $region36: #{tpu_custom_call.1} parent=23 // pred_fallthru
          _
        %s391 = sand.u32 %s66, 1
        %s392 = scalar_lea.sflag [#allocation5], %s391
        %s393 = sand.u32 %s66, 1
        %s394 = smul.addr %s393, 16
        %s395 = scalar_lea.vmem [#allocation6], %s394
        // Predicated region
        $region37: #{tpu_custom_call.1} parent=23 // pred_check
          %p396 = pneg %p76
        $region38: #{tpu_custom_call.1} parent=23 // pred_check_branch
          %398 = sbr.rel (%p396) target = $region40
        $region39: #{tpu_custom_call.1} parent=23 // pred_region
          %s400 = ssub.s32 256, 256
          %401 = vsyncadd %s392, %s400
          %s402 = smul.addr %s22, 2
          %s403 = smul.addr %s402, 128
          %s404 = scalar_lea.hbm %s1, %s403
          %s405 = sshll.u32 %s395, 4
          %s406 = int_to_ptr.vmem [resolvable:$true] %s405
          %411 = dma.vmem_to_hbm [thread:$0]  %s406, 256, %s404, %s392, 128, 128, 8
        $region40: #{tpu_custom_call.1} parent=23 // pred_fallthru
          _
      $region24: #{tpu_custom_call.1} parent=5 // pred_fallthru
        _
      %p412 = scmp.le.s32.totalorder 2, %s13
      // Predicated region
      $region41: #{tpu_custom_call.1} parent=5 // pred_check
        %p413 = pneg %p412
      $region42: #{tpu_custom_call.1} parent=5 // pred_check_branch
        %415 = sbr.rel (%p413) target = $region44
      $region43: #{tpu_custom_call.1} parent=5 // pred_region
        %s416 = ssub.s32 %s13, 2
        // Predicated region
        $region45: #{tpu_custom_call.1} parent=43 // pred_check
          %p417 = pneg %p82
        $region46: #{tpu_custom_call.1} parent=43 // pred_check_branch
          %419 = sbr.rel (%p417) target = $region48
        $region47: #{tpu_custom_call.1} parent=43 // pred_region
          %s420 = sand.u32 %s67, 1
          %s421 = scalar_lea.sflag [#allocation5], %s420
          %s422 = sand.u32 %s67, 1
          %s423 = smul.addr %s422, 16
          %s424 = scalar_lea.vmem [#allocation6], %s423
          %425 = dma.done %s421, 256
        $region48: #{tpu_custom_call.1} parent=43 // pred_fallthru
          _
      $region44: #{tpu_custom_call.1} parent=5 // pred_fallthru
        _
    $region6: #{tpu_custom_call.1} parent=1 // loop_footer
      %s17 = sadd.s32 1, %s13
    $region7: #{tpu_custom_call.1} parent=1 // loop_footer_branch
      %12 = sbr.rel target = $region3
    $region8: #{tpu_custom_call.1} parent=1 // loop_exit
      _
    %426 = vsyncpa [#allocation4], 1
    %s427 = scalar_lea.sflag [#allocation4], 1
    %428 = vsyncpa %s427, 1
    %429 = vsyncpa [#allocation5], 1
    %s430 = scalar_lea.sflag [#allocation5], 1
    %431 = vsyncpa %s430, 1

</llo_original>
